<compile_context>
chip_gen: v7x
topology: tpu7x:2x2x1
jax: 0.10.0
libtpu: 0.0.40
codegen_flags: <defaults>
</compile_context>

<pallas_src>
import functools
import math

import numpy as np
import jax
import jax.numpy as jnp
from jax import lax
from jax.experimental import pallas as pl
from jax.experimental.pallas import tpu as pltpu


def _freq_bands(num_freqs: int, log_space: bool):
    """Frequency bands; matches torch.linspace init in kornia exactly."""
    if log_space:
        bands = 2.0 ** np.linspace(0.0, num_freqs - 1, num_freqs)
    else:
        bands = np.linspace(2.0 ** 0.0, 2.0 ** (num_freqs - 1), num_freqs)
    return tuple(float(f) for f in bands)


def _round_up(a: int, b: int) -> int:
    return (a + b - 1) // b * b


def _pos_enc_kernel(x_ref, o_ref, *, freqs, num_dims, out_dims, chunk):
    # x_ref: (num_dims, R)  feature-major block, rows on the lane axis.
    # o_ref: (R, out_dims)  rows-major block (module's channels-last layout).
    nd = num_dims
    rows_blk = o_ref.shape[0]
    n_chunks = rows_blk // chunk
    pad = (-out_dims) % 8  # pad feature axis to a sublane multiple for the transpose

    # Hoisted loop-invariants (JAX does not CSE broadcasts inside the loop).
    row_id = lax.broadcasted_iota(jnp.int32, (2 * nd, chunk), 0)
    # 0 phase for the sin half, pi/2 for the cos half: cos(z) == sin(z + pi/2).
    phase = jnp.where(row_id < nd, jnp.float32(0.0), jnp.float32(np.pi / 2.0))
    zpad = jnp.zeros((pad, chunk), jnp.float32) if pad else None

    @pl.loop(0, n_chunks)
    def _(c):
        start = pl.multiple_of(c * chunk, chunk)
        # (nd, chunk) lane-dense load; always do the math in f32.
        xc = x_ref[:, pl.ds(start, chunk)].astype(jnp.float32)
        xx = jnp.concatenate([xc, xc], axis=0)                 # (2*nd, chunk)

        parts = [xc]
        for f in freqs:
            # One fused transcendental pass per band over a full 2*nd-row slab.
            parts.append(jnp.sin(xx * jnp.float32(f) + phase))
        if pad:
            parts.append(zpad)

        stack = jnp.concatenate(parts, axis=0)                 # (out_dims+pad, chunk)
        # Single XLU transpose per chunk ((8,128)-aligned operand), then one
        # lane-dense store into the rows-major output block.
        out_t = stack.T[:, :out_dims]                          # (chunk, out_dims)
        o_ref[pl.ds(start, chunk), :] = out_t.astype(o_ref.dtype)


def positional_encode(x, num_freqs: int, log_space: bool = False, *,
                      tile_rows: int = 16384, chunk_rows: int = 512,
                      out_dtype=None, min_grid_steps: int = 2,
                      vmem_limit_bytes: int = 48 * 1024 * 1024):
    """Sine-cosine positional encoding; x has shape (..., num_dims).

    Per-generation tuning: sweep `tile_rows` (16K default fits comfortably in
    VMEM on v5e/v6e/v7x at ~17 MiB double-buffered); raise it on v6e (128 MiB
    physical VMEM) if the per-step overhead shows up, keep >=2 grid steps so
    both v7x TensorCores get work.
    """
    if x.ndim < 1:
        raise ValueError("Input tensor represents a scalar")
    num_dims = x.shape[-1]
    out_dtype = x.dtype if out_dtype is None else jnp.dtype(out_dtype)
    freqs = _freq_bands(num_freqs, log_space)
    out_dims = num_dims * (1 + 2 * num_freqs)

    lead_shape = x.shape[:-1]
    rows = math.prod(lead_shape) if lead_shape else 1

    # Small feature-major input slab (num_dims, rows): rows land on the lane
    # dimension. This wrapper transpose is ~num_dims/out_dims of the traffic;
    # the big output needs NO transpose pass (kernel writes rows-major).
    x_t = x.reshape(rows, num_dims).T

    # Row tile: multiple of 128 and of the chunk; capped so medium inputs keep
    # >= min_grid_steps steps and tiny inputs do not over-allocate.
    tile = min(tile_rows, _round_up(pl.cdiv(rows, min_grid_steps), 128))
    tile = max(tile, 128)
    chunk = min(chunk_rows, tile)
    tile = _round_up(tile, chunk)
    grid = (pl.cdiv(rows, tile),)

    kernel = functools.partial(_pos_enc_kernel, freqs=freqs, num_dims=num_dims,
                               out_dims=out_dims, chunk=chunk)

    out2d = pl.pallas_call(
        kernel,
        out_shape=jax.ShapeDtypeStruct((rows, out_dims), out_dtype),
        grid=grid,
        in_specs=[pl.BlockSpec((num_dims, tile), lambda i: (0, i))],
        out_specs=pl.BlockSpec((tile, out_dims), lambda i: (i, 0)),
        compiler_params=pltpu.CompilerParams(
            dimension_semantics=("parallel",),
            vmem_limit_bytes=vmem_limit_bytes,
        ),
    )(x_t)

    # Pure reshape (row-major), no transpose pass.
    return out2d.reshape(*lead_shape, out_dims)


def _reference(x, num_freqs, log_space=False):
    freqs = _freq_bands(num_freqs, log_space)
    xf = x.astype(jnp.float32)
    pieces = [xf]
    for f in freqs:
        pieces.append(jnp.sin(xf * f))
        pieces.append(jnp.cos(xf * f))
    return jnp.concatenate(pieces, axis=-1)


if __name__ == "__main__":
    num_dims = 4     # input channels (e.g. 3D position + extra)
    num_freqs = 6    # frequency bands
    expected_dims = num_dims * (1 + 2 * num_freqs)

    key = jax.random.PRNGKey(0)
    k0, k1 = jax.random.split(key)

    # Main case.
    x = jax.random.normal(k0, (2, 64, num_dims), dtype=jnp.float32)
    out = jax.block_until_ready(positional_encode(x, num_freqs, log_space=False))
    assert out.shape == (2, 64, expected_dims), out.shape
    ref = _reference(x, num_freqs, log_space=False)
    # cos is computed as sin(z + pi/2); tolerance covers that extra f32 phase rounding.
    assert jnp.allclose(out, ref, atol=1e-4, rtol=1e-4), "mismatch vs reference"

    # Ragged-edge case (rows not a multiple of the tile) + log-spaced bands.
    x2 = jax.random.normal(k1, (3, 50, num_dims), dtype=jnp.float32)
    out2 = jax.block_until_ready(positional_encode(x2, num_freqs, log_space=True))
    assert out2.shape == (3, 50, expected_dims), out2.shape
    ref2 = _reference(x2, num_freqs, log_space=True)
    assert jnp.allclose(out2, ref2, atol=1e-4, rtol=1e-4), "mismatch (log_space / ragged)"

    print("KERNEL_OK")
</pallas_src>

<mosaic_0001>
module attributes {stable_mosaic.version = 11 : i64} {
  func.func @_pos_enc_kernel(%arg0: i32, %arg1: memref<4x128xf32, #tpu.memory_space<vmem>>, %arg2: memref<128x52xf32, #tpu.memory_space<vmem>>) attributes {dimension_semantics = [#tpu.dimension_semantics<parallel>], iteration_bounds = array<i64: 1>, scalar_prefetch = 0 : i64, scratch_operands = 0 : i64, tpu.core_type = #tpu.core_type<tc>, window_params = [{transform_indices = @transform_0, window_bounds = array<i64: 4, 128>}, {transform_indices = @transform_1, window_bounds = array<i64: 128, 52>}]} {
    %0 = tpu.iota {dimensions = array<i32: 0>} : vector<8x128xi32>
    %c4_i32 = arith.constant 4 : i32
    %1 = vector.broadcast %c4_i32 : i32 to vector<8x128xi32>
    %2 = arith.cmpi slt, %0, %1 : vector<8x128xi32>
    %cst = arith.constant 0.000000e+00 : f32
    %cst_0 = arith.constant 1.57079637 : f32
    %3 = vector.broadcast %cst : f32 to vector<8x128xf32>
    %4 = vector.broadcast %cst_0 : f32 to vector<8x128xf32>
    %5 = arith.select %2, %3, %4 : vector<8x128xi1>, vector<8x128xf32>
    %cst_1 = arith.constant 0.000000e+00 : f32
    %6 = vector.broadcast %cst_1 : f32 to vector<4x128xf32>
    %c0_i32 = arith.constant 0 : i32
    %c1_i32 = arith.constant 1 : i32
    %7 = arith.muli %c0_i32, %c1_i32 : i32
    %c0_i32_2 = arith.constant 0 : i32
    %8 = arith.addi %c0_i32_2, %7 : i32
    %c128_i32 = arith.constant 128 : i32
    %9 = arith.muli %8, %c128_i32 : i32
    %10 = tpu.assume_multiple %9, 128 : i32
    %c0 = arith.constant 0 : index
    %11 = arith.index_cast %10 : i32 to index
    %12 = vector.load %arg1[%c0, %11] : memref<4x128xf32, #tpu.memory_space<vmem>>, vector<4x128xf32>
    %13 = tpu.concatenate %12, %12 in 0 : vector<4x128xf32>, vector<4x128xf32> -> vector<8x128xf32>
    %cst_3 = arith.constant 1.000000e+00 : f32
    %14 = vector.broadcast %cst_3 : f32 to vector<8x128xf32>
    %15 = arith.mulf %13, %14 : vector<8x128xf32>
    %16 = arith.addf %15, %5 : vector<8x128xf32>
    %17 = math.sin %16 : vector<8x128xf32>
    %cst_4 = arith.constant 7.1999998 : f32
    %18 = vector.broadcast %cst_4 : f32 to vector<8x128xf32>
    %19 = arith.mulf %13, %18 : vector<8x128xf32>
    %20 = arith.addf %19, %5 : vector<8x128xf32>
    %21 = math.sin %20 : vector<8x128xf32>
    %cst_5 = arith.constant 1.340000e+01 : f32
    %22 = vector.broadcast %cst_5 : f32 to vector<8x128xf32>
    %23 = arith.mulf %13, %22 : vector<8x128xf32>
    %24 = arith.addf %23, %5 : vector<8x128xf32>
    %25 = math.sin %24 : vector<8x128xf32>
    %cst_6 = arith.constant 1.960000e+01 : f32
    %26 = vector.broadcast %cst_6 : f32 to vector<8x128xf32>
    %27 = arith.mulf %13, %26 : vector<8x128xf32>
    %28 = arith.addf %27, %5 : vector<8x128xf32>
    %29 = math.sin %28 : vector<8x128xf32>
    %cst_7 = arith.constant 2.580000e+01 : f32
    %30 = vector.broadcast %cst_7 : f32 to vector<8x128xf32>
    %31 = arith.mulf %13, %30 : vector<8x128xf32>
    %32 = arith.addf %31, %5 : vector<8x128xf32>
    %33 = math.sin %32 : vector<8x128xf32>
    %cst_8 = arith.constant 3.200000e+01 : f32
    %34 = vector.broadcast %cst_8 : f32 to vector<8x128xf32>
    %35 = arith.mulf %13, %34 : vector<8x128xf32>
    %36 = arith.addf %35, %5 : vector<8x128xf32>
    %37 = math.sin %36 : vector<8x128xf32>
    %38 = tpu.concatenate %12, %17, %21, %25, %29, %33, %37, %6 in 0 : vector<4x128xf32>, vector<8x128xf32>, vector<8x128xf32>, vector<8x128xf32>, vector<8x128xf32>, vector<8x128xf32>, vector<8x128xf32>, vector<4x128xf32> -> vector<56x128xf32>
    %39 = tpu.transpose %38, [1, 0] : vector<56x128xf32> -> vector<128x56xf32>
    %40 = vector.extract_strided_slice %39 {offsets = [0, 0], sizes = [128, 52], strides = [1, 1]} : vector<128x56xf32> to vector<128x52xf32>
    %41 = arith.index_cast %10 : i32 to index
    %c0_9 = arith.constant 0 : index
    %42 = vector.load %arg2[%41, %c0_9] : memref<128x52xf32, #tpu.memory_space<vmem>>, vector<128x52xf32>
    tpu.vector_store %arg2[%41, %c0_9], %40 {strides = array<i32>} : memref<128x52xf32, #tpu.memory_space<vmem>>, vector<128x52xf32>,
    %c1_i32_10 = arith.constant 1 : i32
    return
  }
  func.func @transform_0(%arg0: i32) -> (i32, i32) {
    %c0_i32 = arith.constant 0 : i32
    %c0_i32_0 = arith.constant 0 : i32
    return %c0_i32, %arg0 : i32, i32
  }
  func.func @transform_1(%arg0: i32) -> (i32, i32) {
    %c0_i32 = arith.constant 0 : i32
    %c0_i32_0 = arith.constant 0 : i32
    return %arg0, %c0_i32 : i32, i32
  }
}

</mosaic_0001>

<llo_original>
// kernel: tpu_custom_call.1
$region0: #{tpu_custom_call.1}
  #allocation0 [shape = 'u32[]', space=smem, size = 0x4, offset = 0x4, fixed_abs, tag = 'smem constant byte address 0x4 - core index']
  #allocation1 [shape = 'u32[144,128]{1,0:T(1,128)}', space=vmem, size = 0x12000, scoped, tag = 'internal scratch']
  %s0 = inlined_call_operand.hbm [shape: f32[4,128], index: 0, kind: input, shape index: {}]
  %s1 = inlined_call_operand.vmem [shape: f32[128,52], index: 1, kind: output, shape index: {}]
  %s2 = sld [smem:[#allocation0]]
  $region18: #{tpu_custom_call.1} parent=0
    _
  %s4 = ssub.s32 1, %s2
  %s5 = scalar_select 0, %s4, %s2
  $region1: #{tpu_custom_call.1} parent=0
    #allocation2 [shape = 'u8[2048]{0}', space=vmem, size = 0x800, scoped, tag = 'input window, operand 0, single buffered']
    #allocation3 [shape = 's32[1]{0}', space=sflag, size = 0x4, scoped, tag = 'scoped memory for tpu_custom_call.1']
    %6 = vsyncpa [#allocation3], 0
    // Predicated region
    $region2: #{tpu_custom_call.1} parent=1 // pred_check
      _
    $region3: #{tpu_custom_call.1} parent=1 // pred_check_branch
      %8 = sbr.rel (0) target = $region5
    $region4: #{tpu_custom_call.1} parent=1 // pred_region
      %s10 = ssub.s32 64, 64
      %11 = vsyncadd [#allocation3], %s10
      %s13 = sshll.u32 [#allocation2], 4
      %s14 = int_to_ptr.vmem [resolvable:$true] %s13
      %16 = dma.hbm_to_vmem [thread:$0]  %s0, 64, %s14, [#allocation3]
    $region5: #{tpu_custom_call.1} parent=1 // pred_fallthru
      _
    // Predicated region
    $region6: #{tpu_custom_call.1} parent=1 // pred_check
      _
    $region7: #{tpu_custom_call.1} parent=1 // pred_check_branch
      %18 = sbr.rel (0) target = $region9
    $region8: #{tpu_custom_call.1} parent=1 // pred_region
      %19 = dma.done [#allocation3], 64
    $region9: #{tpu_custom_call.1} parent=1 // pred_fallthru
      _
    %v20 = vlaneseq
    %v21 = vshrl.u32 %v20, 7
    %vm22 = vcmp.lt.s32.totalorder %v21, 4
    %v23 = vsel %vm22, 0.0, 1.5707964
    %v24 = vld [vmem:[#allocation2] sm:$0xf]
    %v26 = vrot.slane %v24, 4
    %vm28 = vcmask 1043456
    %v29 = vsel %vm28, %v24, %v26
    %v30 = vadd.f32 %v29, %v23
    %v31 = vand.u32 2147483647, %v30
    %vm32 = vcmp.le.f32.partialorder %v31, 0.7853982
    %vm33 = vcmp.lt.s32.totalorder %v30, 0
    %v34 = vand.u32 %v30, 2139095040
    %v35 = vshrl.u32 %v34, 23
    %v36 = vsub.s32 %v35, 127
    %v37 = vand.u32 2147483647, %v30
    %v38 = vand.u32 %v37, 8388607
    %v39 = vor.u32 %v38, 8388608
    %v40 = vsub.s32 0, %v39
    %v41 = vadd.s32 %v36, 1
    %vm42 = vcmp.gt.s32.totalorder %v41, 0
    %v43 = vsel %vm42, %v41, 0
    %v44 = vshrl.u32 %v43, 5
    %v45 = vand.u32 %v43, 31
    %v46 = vsub.s32 32, %v45
    %v47 = vshrl.u32 683565275, %v46
    %v48 = vshll.u32 683565275, %v45
    %v49 = vshrl.u32 2475754826, %v46
    %v50 = vor.u32 %v48, %v49
    %v51 = vshll.u32 2475754826, %v45
    %v52 = vshrl.u32 2131351028, %v46
    %v53 = vor.u32 %v51, %v52
    %v54 = vshll.u32 2131351028, %v45
    %v55 = vshrl.u32 2102212464, %v46
    %v56 = vor.u32 %v54, %v55
    %v57 = vshll.u32 2102212464, %v45
    %v58 = vshrl.u32 920167782, %v46
    %v59 = vor.u32 %v57, %v58
    %v60 = vshll.u32 920167782, %v45
    %v61 = vshrl.u32 1326507024, %v46
    %v62 = vor.u32 %v60, %v61
    %vm63 = vcmp.lt.s32.totalorder %v44, 1
    %vm64 = vcmp.lt.s32.totalorder %v44, 2
    %vm65 = vcmp.lt.s32.totalorder %v44, 3
    %vm66 = vcmp.lt.s32.totalorder %v44, 4
    %v67 = vsel %vm63, %v47, %v50
    %v68 = vsel %vm66, %v56, 2102212464
    %v69 = vsel %vm65, %v53, %v68
    %v70 = vsel %vm64, %v67, %v69
    %v71 = vsel %vm63, %v50, %v53
    %v72 = vsel %vm66, %v59, 920167782
    %v73 = vsel %vm65, %v56, %v72
    %v74 = vsel %vm64, %v71, %v73
    %v75 = vsel %vm63, %v53, %v56
    %v76 = vsel %vm66, %v62, 1326507024
    %v77 = vsel %vm65, %v59, %v76
    %v78 = vsel %vm64, %v75, %v77
    %v79 = vshll.u32 %v39, 8
    %v80 = vmul.u32.u64.compose %v79, %v78
    %v81 = vextract.low.u32 %v80
    %v82 = vextract.high.u32 %v80
    %v83 = vmul.u32.u64.compose %v79, %v74
    %v84 = vextract.low.u32 %v83
    %v85 = vextract.high.u32 %v83
    %v86 = vmul.u32 %v79, %v70
    %v87 = vadd.s32 %v82, %v84
    %vm88 = vc.u32 %v82, %v84
    %v89 = vadd.s32 %v85, 1
    %v90 = vsel %vm88, %v89, %v85
    %v91 = vadd.s32 %v86, %v90
    %v92 = vadd.s32 %v91, 536870912
    %v93 = vshrl.u32 %v92, 30
    %v94 = vshll.u32 %v93, 30
    %v95 = vsub.s32 %v91, %v94
    %vm96 = vcmp.lt.s32.totalorder %v95, 0
    %v97 = vsub.s32 0, %v95
    %v98 = vsel %vm96, %v97, %v95
    %v99 = vclz %v98
    %v100 = vsub.s32 %v99, 2
    %vm101 = vcmp.gt.s32.totalorder 0, %v100
    %v102 = vsel %vm101, 0, %v100
    %v103 = vsub.s32 32, %v102
    %v104 = vshll.u32 %v95, %v102
    %v105 = vshrl.u32 %v87, %v103
    %v106 = vor.u32 %v104, %v105
    %v107 = vsub.s32 4294967266, %v102
    %v108 = vadd.s32 %v107, 127
    %v109 = vshll.u32 %v108, 23
    %v110 = vor.u32 4788187, %v109
    %v111 = vand.u32 2147483647, %v110
    %v113 = vcvt.s32.f32 %v106
    %v114 = vmul.f32 %v113, %v111
    %v115 = vxor.u32 %v114, 2147483648
    %v116 = vsel %vm33, %v115, %v114
    %v117 = vsub.s32 4, %v93
    %v118 = vsel %vm33, %v117, %v93
    %v119 = vsel %vm32, %v30, %v116
    %v120 = vsel %vm32, 0, %v118
    %v121 = vcosq.f32.pop %v119
    %v122 = vsinq.f32.pop %v119
    %vm123 = vweird.f32 %v30
    %v124 = vadd.s32 %v120, 3
    %v125 = vand.u32 %v124, 3
    %vm126 = vcmp.lt.s32.totalorder %v125, 2
    %vm127 = vcmp.eq.s32.totalorder %v125, 0
    %v128 = vxor.u32 %v122, 2147483648
    %v129 = vsel %vm127, %v121, %v128
    %vm130 = vcmp.eq.s32.totalorder %v125, 2
    %v131 = vxor.u32 %v121, 2147483648
    %v132 = vsel %vm130, %v131, %v122
    %v133 = vsel %vm126, %v129, %v132
    %v134 = vsel %vm123, nan, %v133
    %v135 = vmul.f32 %v29, 7.2
    %v136 = vadd.f32 %v135, %v23
    %v137 = vand.u32 2147483647, %v136
    %vm138 = vcmp.le.f32.partialorder %v137, 0.7853982
    %vm139 = vcmp.lt.s32.totalorder %v136, 0
    %v140 = vand.u32 %v136, 2139095040
    %v141 = vshrl.u32 %v140, 23
    %v142 = vsub.s32 %v141, 127
    %v143 = vand.u32 2147483647, %v136
    %v144 = vand.u32 %v143, 8388607
    %v145 = vor.u32 %v144, 8388608
    %v146 = vsub.s32 0, %v145
    %v147 = vadd.s32 %v142, 1
    %vm148 = vcmp.gt.s32.totalorder %v147, 0
    %v149 = vsel %vm148, %v147, 0
    %v150 = vshrl.u32 %v149, 5
    %v151 = vand.u32 %v149, 31
    %v152 = vsub.s32 32, %v151
    %v153 = vshrl.u32 683565275, %v152
    %v154 = vshll.u32 683565275, %v151
    %v155 = vshrl.u32 2475754826, %v152
    %v156 = vor.u32 %v154, %v155
    %v157 = vshll.u32 2475754826, %v151
    %v158 = vshrl.u32 2131351028, %v152
    %v159 = vor.u32 %v157, %v158
    %v160 = vshll.u32 2131351028, %v151
    %v161 = vshrl.u32 2102212464, %v152
    %v162 = vor.u32 %v160, %v161
    %v163 = vshll.u32 2102212464, %v151
    %v164 = vshrl.u32 920167782, %v152
    %v165 = vor.u32 %v163, %v164
    %v166 = vshll.u32 920167782, %v151
    %v167 = vshrl.u32 1326507024, %v152
    %v168 = vor.u32 %v166, %v167
    %vm169 = vcmp.lt.s32.totalorder %v150, 1
    %vm170 = vcmp.lt.s32.totalorder %v150, 2
    %vm171 = vcmp.lt.s32.totalorder %v150, 3
    %vm172 = vcmp.lt.s32.totalorder %v150, 4
    %v173 = vsel %vm169, %v153, %v156
    %v174 = vsel %vm172, %v162, 2102212464
    %v175 = vsel %vm171, %v159, %v174
    %v176 = vsel %vm170, %v173, %v175
    %v177 = vsel %vm169, %v156, %v159
    %v178 = vsel %vm172, %v165, 920167782
    %v179 = vsel %vm171, %v162, %v178
    %v180 = vsel %vm170, %v177, %v179
    %v181 = vsel %vm169, %v159, %v162
    %v182 = vsel %vm172, %v168, 1326507024
    %v183 = vsel %vm171, %v165, %v182
    %v184 = vsel %vm170, %v181, %v183
    %v185 = vshll.u32 %v145, 8
    %v186 = vmul.u32.u64.compose %v185, %v184
    %v187 = vextract.low.u32 %v186
    %v188 = vextract.high.u32 %v186
    %v189 = vmul.u32.u64.compose %v185, %v180
    %v190 = vextract.low.u32 %v189
    %v191 = vextract.high.u32 %v189
    %v192 = vmul.u32 %v185, %v176
    %v193 = vadd.s32 %v188, %v190
    %vm194 = vc.u32 %v188, %v190
    %v195 = vadd.s32 %v191, 1
    %v196 = vsel %vm194, %v195, %v191
    %v197 = vadd.s32 %v192, %v196
    %v198 = vadd.s32 %v197, 536870912
    %v199 = vshrl.u32 %v198, 30
    %v200 = vshll.u32 %v199, 30
    %v201 = vsub.s32 %v197, %v200
    %vm202 = vcmp.lt.s32.totalorder %v201, 0
    %v203 = vsub.s32 0, %v201
    %v204 = vsel %vm202, %v203, %v201
    %v205 = vclz %v204
    %v206 = vsub.s32 %v205, 2
    %vm207 = vcmp.gt.s32.totalorder 0, %v206
    %v208 = vsel %vm207, 0, %v206
    %v209 = vsub.s32 32, %v208
    %v210 = vshll.u32 %v201, %v208
    %v211 = vshrl.u32 %v193, %v209
    %v212 = vor.u32 %v210, %v211
    %v213 = vsub.s32 4294967266, %v208
    %v214 = vadd.s32 %v213, 127
    %v215 = vshll.u32 %v214, 23
    %v216 = vor.u32 4788187, %v215
    %v217 = vand.u32 2147483647, %v216
    %v219 = vcvt.s32.f32 %v212
    %v220 = vmul.f32 %v219, %v217
    %v221 = vxor.u32 %v220, 2147483648
    %v222 = vsel %vm139, %v221, %v220
    %v223 = vsub.s32 4, %v199
    %v224 = vsel %vm139, %v223, %v199
    %v225 = vsel %vm138, %v136, %v222
    %v226 = vsel %vm138, 0, %v224
    %v227 = vcosq.f32.pop %v225
    %v228 = vsinq.f32.pop %v225
    %vm229 = vweird.f32 %v136
    %v230 = vadd.s32 %v226, 3
    %v231 = vand.u32 %v230, 3
    %vm232 = vcmp.lt.s32.totalorder %v231, 2
    %vm233 = vcmp.eq.s32.totalorder %v231, 0
    %v234 = vxor.u32 %v228, 2147483648
    %v235 = vsel %vm233, %v227, %v234
    %vm236 = vcmp.eq.s32.totalorder %v231, 2
    %v237 = vxor.u32 %v227, 2147483648
    %v238 = vsel %vm236, %v237, %v228
    %v239 = vsel %vm232, %v235, %v238
    %v240 = vsel %vm229, nan, %v239
    %v241 = vmul.f32 %v29, 13.4
    %v242 = vadd.f32 %v241, %v23
    %v243 = vand.u32 2147483647, %v242
    %vm244 = vcmp.le.f32.partialorder %v243, 0.7853982
    %vm245 = vcmp.lt.s32.totalorder %v242, 0
    %v246 = vand.u32 %v242, 2139095040
    %v247 = vshrl.u32 %v246, 23
    %v248 = vsub.s32 %v247, 127
    %v249 = vand.u32 2147483647, %v242
    %v250 = vand.u32 %v249, 8388607
    %v251 = vor.u32 %v250, 8388608
    %v252 = vsub.s32 0, %v251
    %v253 = vadd.s32 %v248, 1
    %vm254 = vcmp.gt.s32.totalorder %v253, 0
    %v255 = vsel %vm254, %v253, 0
    %v256 = vshrl.u32 %v255, 5
    %v257 = vand.u32 %v255, 31
    %v258 = vsub.s32 32, %v257
    %v259 = vshrl.u32 683565275, %v258
    %v260 = vshll.u32 683565275, %v257
    %v261 = vshrl.u32 2475754826, %v258
    %v262 = vor.u32 %v260, %v261
    %v263 = vshll.u32 2475754826, %v257
    %v264 = vshrl.u32 2131351028, %v258
    %v265 = vor.u32 %v263, %v264
    %v266 = vshll.u32 2131351028, %v257
    %v267 = vshrl.u32 2102212464, %v258
    %v268 = vor.u32 %v266, %v267
    %v269 = vshll.u32 2102212464, %v257
    %v270 = vshrl.u32 920167782, %v258
    %v271 = vor.u32 %v269, %v270
    %v272 = vshll.u32 920167782, %v257
    %v273 = vshrl.u32 1326507024, %v258
    %v274 = vor.u32 %v272, %v273
    %vm275 = vcmp.lt.s32.totalorder %v256, 1
    %vm276 = vcmp.lt.s32.totalorder %v256, 2
    %vm277 = vcmp.lt.s32.totalorder %v256, 3
    %vm278 = vcmp.lt.s32.totalorder %v256, 4
    %v279 = vsel %vm275, %v259, %v262
    %v280 = vsel %vm278, %v268, 2102212464
    %v281 = vsel %vm277, %v265, %v280
    %v282 = vsel %vm276, %v279, %v281
    %v283 = vsel %vm275, %v262, %v265
    %v284 = vsel %vm278, %v271, 920167782
    %v285 = vsel %vm277, %v268, %v284
    %v286 = vsel %vm276, %v283, %v285
    %v287 = vsel %vm275, %v265, %v268
    %v288 = vsel %vm278, %v274, 1326507024
    %v289 = vsel %vm277, %v271, %v288
    %v290 = vsel %vm276, %v287, %v289
    %v291 = vshll.u32 %v251, 8
    %v292 = vmul.u32.u64.compose %v291, %v290
    %v293 = vextract.low.u32 %v292
    %v294 = vextract.high.u32 %v292
    %v295 = vmul.u32.u64.compose %v291, %v286
    %v296 = vextract.low.u32 %v295
    %v297 = vextract.high.u32 %v295
    %v298 = vmul.u32 %v291, %v282
    %v299 = vadd.s32 %v294, %v296
    %vm300 = vc.u32 %v294, %v296
    %v301 = vadd.s32 %v297, 1
    %v302 = vsel %vm300, %v301, %v297
    %v303 = vadd.s32 %v298, %v302
    %v304 = vadd.s32 %v303, 536870912
    %v305 = vshrl.u32 %v304, 30
    %v306 = vshll.u32 %v305, 30
    %v307 = vsub.s32 %v303, %v306
    %vm308 = vcmp.lt.s32.totalorder %v307, 0
    %v309 = vsub.s32 0, %v307
    %v310 = vsel %vm308, %v309, %v307
    %v311 = vclz %v310
    %v312 = vsub.s32 %v311, 2
    %vm313 = vcmp.gt.s32.totalorder 0, %v312
    %v314 = vsel %vm313, 0, %v312
    %v315 = vsub.s32 32, %v314
    %v316 = vshll.u32 %v307, %v314
    %v317 = vshrl.u32 %v299, %v315
    %v318 = vor.u32 %v316, %v317
    %v319 = vsub.s32 4294967266, %v314
    %v320 = vadd.s32 %v319, 127
    %v321 = vshll.u32 %v320, 23
    %v322 = vor.u32 4788187, %v321
    %v323 = vand.u32 2147483647, %v322
    %v325 = vcvt.s32.f32 %v318
    %v326 = vmul.f32 %v325, %v323
    %v327 = vxor.u32 %v326, 2147483648
    %v328 = vsel %vm245, %v327, %v326
    %v329 = vsub.s32 4, %v305
    %v330 = vsel %vm245, %v329, %v305
    %v331 = vsel %vm244, %v242, %v328
    %v332 = vsel %vm244, 0, %v330
    %v333 = vcosq.f32.pop %v331
    %v334 = vsinq.f32.pop %v331
    %vm335 = vweird.f32 %v242
    %v336 = vadd.s32 %v332, 3
    %v337 = vand.u32 %v336, 3
    %vm338 = vcmp.lt.s32.totalorder %v337, 2
    %vm339 = vcmp.eq.s32.totalorder %v337, 0
    %v340 = vxor.u32 %v334, 2147483648
    %v341 = vsel %vm339, %v333, %v340
    %vm342 = vcmp.eq.s32.totalorder %v337, 2
    %v343 = vxor.u32 %v333, 2147483648
    %v344 = vsel %vm342, %v343, %v334
    %v345 = vsel %vm338, %v341, %v344
    %v346 = vsel %vm335, nan, %v345
    %v347 = vmul.f32 %v29, 19.6
    %v348 = vadd.f32 %v347, %v23
    %v349 = vand.u32 2147483647, %v348
    %vm350 = vcmp.le.f32.partialorder %v349, 0.7853982
    %vm351 = vcmp.lt.s32.totalorder %v348, 0
    %v352 = vand.u32 %v348, 2139095040
    %v353 = vshrl.u32 %v352, 23
    %v354 = vsub.s32 %v353, 127
    %v355 = vand.u32 2147483647, %v348
    %v356 = vand.u32 %v355, 8388607
    %v357 = vor.u32 %v356, 8388608
    %v358 = vsub.s32 0, %v357
    %v359 = vadd.s32 %v354, 1
    %vm360 = vcmp.gt.s32.totalorder %v359, 0
    %v361 = vsel %vm360, %v359, 0
    %v362 = vshrl.u32 %v361, 5
    %v363 = vand.u32 %v361, 31
    %v364 = vsub.s32 32, %v363
    %v365 = vshrl.u32 683565275, %v364
    %v366 = vshll.u32 683565275, %v363
    %v367 = vshrl.u32 2475754826, %v364
    %v368 = vor.u32 %v366, %v367
    %v369 = vshll.u32 2475754826, %v363
    %v370 = vshrl.u32 2131351028, %v364
    %v371 = vor.u32 %v369, %v370
    %v372 = vshll.u32 2131351028, %v363
    %v373 = vshrl.u32 2102212464, %v364
    %v374 = vor.u32 %v372, %v373
    %v375 = vshll.u32 2102212464, %v363
    %v376 = vshrl.u32 920167782, %v364
    %v377 = vor.u32 %v375, %v376
    %v378 = vshll.u32 920167782, %v363
    %v379 = vshrl.u32 1326507024, %v364
    %v380 = vor.u32 %v378, %v379
    %vm381 = vcmp.lt.s32.totalorder %v362, 1
    %vm382 = vcmp.lt.s32.totalorder %v362, 2
    %vm383 = vcmp.lt.s32.totalorder %v362, 3
    %vm384 = vcmp.lt.s32.totalorder %v362, 4
    %v385 = vsel %vm381, %v365, %v368
    %v386 = vsel %vm384, %v374, 2102212464
    %v387 = vsel %vm383, %v371, %v386
    %v388 = vsel %vm382, %v385, %v387
    %v389 = vsel %vm381, %v368, %v371
    %v390 = vsel %vm384, %v377, 920167782
    %v391 = vsel %vm383, %v374, %v390
    %v392 = vsel %vm382, %v389, %v391
    %v393 = vsel %vm381, %v371, %v374
    %v394 = vsel %vm384, %v380, 1326507024
    %v395 = vsel %vm383, %v377, %v394
    %v396 = vsel %vm382, %v393, %v395
    %v397 = vshll.u32 %v357, 8
    %v398 = vmul.u32.u64.compose %v397, %v396
    %v399 = vextract.low.u32 %v398
    %v400 = vextract.high.u32 %v398
    %v401 = vmul.u32.u64.compose %v397, %v392
    %v402 = vextract.low.u32 %v401
    %v403 = vextract.high.u32 %v401
    %v404 = vmul.u32 %v397, %v388
    %v405 = vadd.s32 %v400, %v402
    %vm406 = vc.u32 %v400, %v402
    %v407 = vadd.s32 %v403, 1
    %v408 = vsel %vm406, %v407, %v403
    %v409 = vadd.s32 %v404, %v408
    %v410 = vadd.s32 %v409, 536870912
    %v411 = vshrl.u32 %v410, 30
    %v412 = vshll.u32 %v411, 30
    %v413 = vsub.s32 %v409, %v412
    %vm414 = vcmp.lt.s32.totalorder %v413, 0
    %v415 = vsub.s32 0, %v413
    %v416 = vsel %vm414, %v415, %v413
    %v417 = vclz %v416
    %v418 = vsub.s32 %v417, 2
    %vm419 = vcmp.gt.s32.totalorder 0, %v418
    %v420 = vsel %vm419, 0, %v418
    %v421 = vsub.s32 32, %v420
    %v422 = vshll.u32 %v413, %v420
    %v423 = vshrl.u32 %v405, %v421
    %v424 = vor.u32 %v422, %v423
    %v425 = vsub.s32 4294967266, %v420
    %v426 = vadd.s32 %v425, 127
    %v427 = vshll.u32 %v426, 23
    %v428 = vor.u32 4788187, %v427
    %v429 = vand.u32 2147483647, %v428
    %v431 = vcvt.s32.f32 %v424
    %v432 = vmul.f32 %v431, %v429
    %v433 = vxor.u32 %v432, 2147483648
    %v434 = vsel %vm351, %v433, %v432
    %v435 = vsub.s32 4, %v411
    %v436 = vsel %vm351, %v435, %v411
    %v437 = vsel %vm350, %v348, %v434
    %v438 = vsel %vm350, 0, %v436
    %v439 = vcosq.f32.pop %v437
    %v440 = vsinq.f32.pop %v437
    %vm441 = vweird.f32 %v348
    %v442 = vadd.s32 %v438, 3
    %v443 = vand.u32 %v442, 3
    %vm444 = vcmp.lt.s32.totalorder %v443, 2
    %vm445 = vcmp.eq.s32.totalorder %v443, 0
    %v446 = vxor.u32 %v440, 2147483648
    %v447 = vsel %vm445, %v439, %v446
    %vm448 = vcmp.eq.s32.totalorder %v443, 2
    %v449 = vxor.u32 %v439, 2147483648
    %v450 = vsel %vm448, %v449, %v440
    %v451 = vsel %vm444, %v447, %v450
    %v452 = vsel %vm441, nan, %v451
    %v453 = vmul.f32 %v29, 25.8
    %v454 = vadd.f32 %v453, %v23
    %v455 = vand.u32 2147483647, %v454
    %vm456 = vcmp.le.f32.partialorder %v455, 0.7853982
    %vm457 = vcmp.lt.s32.totalorder %v454, 0
    %v458 = vand.u32 %v454, 2139095040
    %v459 = vshrl.u32 %v458, 23
    %v460 = vsub.s32 %v459, 127
    %v461 = vand.u32 2147483647, %v454
    %v462 = vand.u32 %v461, 8388607
    %v463 = vor.u32 %v462, 8388608
    %v464 = vsub.s32 0, %v463
    %v465 = vadd.s32 %v460, 1
    %vm466 = vcmp.gt.s32.totalorder %v465, 0
    %v467 = vsel %vm466, %v465, 0
    %v468 = vshrl.u32 %v467, 5
    %v469 = vand.u32 %v467, 31
    %v470 = vsub.s32 32, %v469
    %v471 = vshrl.u32 683565275, %v470
    %v472 = vshll.u32 683565275, %v469
    %v473 = vshrl.u32 2475754826, %v470
    %v474 = vor.u32 %v472, %v473
    %v475 = vshll.u32 2475754826, %v469
    %v476 = vshrl.u32 2131351028, %v470
    %v477 = vor.u32 %v475, %v476
    %v478 = vshll.u32 2131351028, %v469
    %v479 = vshrl.u32 2102212464, %v470
    %v480 = vor.u32 %v478, %v479
    %v481 = vshll.u32 2102212464, %v469
    %v482 = vshrl.u32 920167782, %v470
    %v483 = vor.u32 %v481, %v482
    %v484 = vshll.u32 920167782, %v469
    %v485 = vshrl.u32 1326507024, %v470
    %v486 = vor.u32 %v484, %v485
    %vm487 = vcmp.lt.s32.totalorder %v468, 1
    %vm488 = vcmp.lt.s32.totalorder %v468, 2
    %vm489 = vcmp.lt.s32.totalorder %v468, 3
    %vm490 = vcmp.lt.s32.totalorder %v468, 4
    %v491 = vsel %vm487, %v471, %v474
    %v492 = vsel %vm490, %v480, 2102212464
    %v493 = vsel %vm489, %v477, %v492
    %v494 = vsel %vm488, %v491, %v493
    %v495 = vsel %vm487, %v474, %v477
    %v496 = vsel %vm490, %v483, 920167782
    %v497 = vsel %vm489, %v480, %v496
    %v498 = vsel %vm488, %v495, %v497
    %v499 = vsel %vm487, %v477, %v480
    %v500 = vsel %vm490, %v486, 1326507024
    %v501 = vsel %vm489, %v483, %v500
    %v502 = vsel %vm488, %v499, %v501
    %v503 = vshll.u32 %v463, 8
    %v504 = vmul.u32.u64.compose %v503, %v502
    %v505 = vextract.low.u32 %v504
    %v506 = vextract.high.u32 %v504
    %v507 = vmul.u32.u64.compose %v503, %v498
    %v508 = vextract.low.u32 %v507
    %v509 = vextract.high.u32 %v507
    %v510 = vmul.u32 %v503, %v494
    %v511 = vadd.s32 %v506, %v508
    %vm512 = vc.u32 %v506, %v508
    %v513 = vadd.s32 %v509, 1
    %v514 = vsel %vm512, %v513, %v509
    %v515 = vadd.s32 %v510, %v514
    %v516 = vadd.s32 %v515, 536870912
    %v517 = vshrl.u32 %v516, 30
    %v518 = vshll.u32 %v517, 30
    %v519 = vsub.s32 %v515, %v518
    %vm520 = vcmp.lt.s32.totalorder %v519, 0
    %v521 = vsub.s32 0, %v519
    %v522 = vsel %vm520, %v521, %v519
    %v523 = vclz %v522
    %v524 = vsub.s32 %v523, 2
    %vm525 = vcmp.gt.s32.totalorder 0, %v524
    %v526 = vsel %vm525, 0, %v524
    %v527 = vsub.s32 32, %v526
    %v528 = vshll.u32 %v519, %v526
    %v529 = vshrl.u32 %v511, %v527
    %v530 = vor.u32 %v528, %v529
    %v531 = vsub.s32 4294967266, %v526
    %v532 = vadd.s32 %v531, 127
    %v533 = vshll.u32 %v532, 23
    %v534 = vor.u32 4788187, %v533
    %v535 = vand.u32 2147483647, %v534
    %v537 = vcvt.s32.f32 %v530
    %v538 = vmul.f32 %v537, %v535
    %v539 = vxor.u32 %v538, 2147483648
    %v540 = vsel %vm457, %v539, %v538
    %v541 = vsub.s32 4, %v517
    %v542 = vsel %vm457, %v541, %v517
    %v543 = vsel %vm456, %v454, %v540
    %v544 = vsel %vm456, 0, %v542
    %v545 = vcosq.f32.pop %v543
    %v546 = vsinq.f32.pop %v543
    %vm547 = vweird.f32 %v454
    %v548 = vadd.s32 %v544, 3
    %v549 = vand.u32 %v548, 3
    %vm550 = vcmp.lt.s32.totalorder %v549, 2
    %vm551 = vcmp.eq.s32.totalorder %v549, 0
    %v552 = vxor.u32 %v546, 2147483648
    %v553 = vsel %vm551, %v545, %v552
    %vm554 = vcmp.eq.s32.totalorder %v549, 2
    %v555 = vxor.u32 %v545, 2147483648
    %v556 = vsel %vm554, %v555, %v546
    %v557 = vsel %vm550, %v553, %v556
    %v558 = vsel %vm547, nan, %v557
    %v559 = vmul.f32 %v29, 32.0
    %v560 = vadd.f32 %v559, %v23
    %v561 = vand.u32 2147483647, %v560
    %vm562 = vcmp.le.f32.partialorder %v561, 0.7853982
    %vm563 = vcmp.lt.s32.totalorder %v560, 0
    %v564 = vand.u32 %v560, 2139095040
    %v565 = vshrl.u32 %v564, 23
    %v566 = vsub.s32 %v565, 127
    %v567 = vand.u32 2147483647, %v560
    %v568 = vand.u32 %v567, 8388607
    %v569 = vor.u32 %v568, 8388608
    %v570 = vsub.s32 0, %v569
    %v571 = vadd.s32 %v566, 1
    %vm572 = vcmp.gt.s32.totalorder %v571, 0
    %v573 = vsel %vm572, %v571, 0
    %v574 = vshrl.u32 %v573, 5
    %v575 = vand.u32 %v573, 31
    %v576 = vsub.s32 32, %v575
    %v577 = vshrl.u32 683565275, %v576
    %v578 = vshll.u32 683565275, %v575
    %v579 = vshrl.u32 2475754826, %v576
    %v580 = vor.u32 %v578, %v579
    %v581 = vshll.u32 2475754826, %v575
    %v582 = vshrl.u32 2131351028, %v576
    %v583 = vor.u32 %v581, %v582
    %v584 = vshll.u32 2131351028, %v575
    %v585 = vshrl.u32 2102212464, %v576
    %v586 = vor.u32 %v584, %v585
    %v587 = vshll.u32 2102212464, %v575
    %v588 = vshrl.u32 920167782, %v576
    %v589 = vor.u32 %v587, %v588
    %v590 = vshll.u32 920167782, %v575
    %v591 = vshrl.u32 1326507024, %v576
    %v592 = vor.u32 %v590, %v591
    %vm593 = vcmp.lt.s32.totalorder %v574, 1
    %vm594 = vcmp.lt.s32.totalorder %v574, 2
    %vm595 = vcmp.lt.s32.totalorder %v574, 3
    %vm596 = vcmp.lt.s32.totalorder %v574, 4
    %v597 = vsel %vm593, %v577, %v580
    %v598 = vsel %vm596, %v586, 2102212464
    %v599 = vsel %vm595, %v583, %v598
    %v600 = vsel %vm594, %v597, %v599
    %v601 = vsel %vm593, %v580, %v583
    %v602 = vsel %vm596, %v589, 920167782
    %v603 = vsel %vm595, %v586, %v602
    %v604 = vsel %vm594, %v601, %v603
    %v605 = vsel %vm593, %v583, %v586
    %v606 = vsel %vm596, %v592, 1326507024
    %v607 = vsel %vm595, %v589, %v606
    %v608 = vsel %vm594, %v605, %v607
    %v609 = vshll.u32 %v569, 8
    %v610 = vmul.u32.u64.compose %v609, %v608
    %v611 = vextract.low.u32 %v610
    %v612 = vextract.high.u32 %v610
    %v613 = vmul.u32.u64.compose %v609, %v604
    %v614 = vextract.low.u32 %v613
    %v615 = vextract.high.u32 %v613
    %v616 = vmul.u32 %v609, %v600
    %v617 = vadd.s32 %v612, %v614
    %vm618 = vc.u32 %v612, %v614
    %v619 = vadd.s32 %v615, 1
    %v620 = vsel %vm618, %v619, %v615
    %v621 = vadd.s32 %v616, %v620
    %v622 = vadd.s32 %v621, 536870912
    %v623 = vshrl.u32 %v622, 30
    %v624 = vshll.u32 %v623, 30
    %v625 = vsub.s32 %v621, %v624
    %vm626 = vcmp.lt.s32.totalorder %v625, 0
    %v627 = vsub.s32 0, %v625
    %v628 = vsel %vm626, %v627, %v625
    %v629 = vclz %v628
    %v630 = vsub.s32 %v629, 2
    %vm631 = vcmp.gt.s32.totalorder 0, %v630
    %v632 = vsel %vm631, 0, %v630
    %v633 = vsub.s32 32, %v632
    %v634 = vshll.u32 %v625, %v632
    %v635 = vshrl.u32 %v617, %v633
    %v636 = vor.u32 %v634, %v635
    %v637 = vsub.s32 4294967266, %v632
    %v638 = vadd.s32 %v637, 127
    %v639 = vshll.u32 %v638, 23
    %v640 = vor.u32 4788187, %v639
    %v641 = vand.u32 2147483647, %v640
    %v643 = vcvt.s32.f32 %v636
    %v644 = vmul.f32 %v643, %v641
    %v645 = vxor.u32 %v644, 2147483648
    %v646 = vsel %vm563, %v645, %v644
    %v647 = vsub.s32 4, %v623
    %v648 = vsel %vm563, %v647, %v623
    %v649 = vsel %vm562, %v560, %v646
    %v650 = vsel %vm562, 0, %v648
    %v651 = vcosq.f32.pop %v649
    %v652 = vsinq.f32.pop %v649
    %vm653 = vweird.f32 %v560
    %v654 = vadd.s32 %v650, 3
    %v655 = vand.u32 %v654, 3
    %vm656 = vcmp.lt.s32.totalorder %v655, 2
    %vm657 = vcmp.eq.s32.totalorder %v655, 0
    %v658 = vxor.u32 %v652, 2147483648
    %v659 = vsel %vm657, %v651, %v658
    %vm660 = vcmp.eq.s32.totalorder %v655, 2
    %v661 = vxor.u32 %v651, 2147483648
    %v662 = vsel %vm660, %v661, %v652
    %v663 = vsel %vm656, %v659, %v662
    %v664 = vsel %vm653, nan, %v663
    %v666 = vrot.slane %v134, 4
    %v669 = vrot.slane %v240, 4
    %v672 = vrot.slane %v346, 4
    %v675 = vrot.slane %v452, 4
    %v678 = vrot.slane %v558, 4
    %v681 = vrot.slane %v664, 4
    %v683 = vsel %vm28, %v24, %v666
    %v684 = vsel %vm28, %v666, %v669
    %v685 = vsel %vm28, %v669, %v672
    %v686 = vsel %vm28, %v672, %v675
    %v687 = vsel %vm28, %v675, %v678
    %v688 = vsel %vm28, %v678, %v681
    %v689 = vsel %vm28, %v681, 0.0
    %690 = vxpose.xlu0.b32.start [1/16] %v683, 128
    %691 = vxpose.xlu0.b32.cont [2/16] %v684, 128
    %692 = vxpose.xlu0.b32.cont [3/16] %v685, 128
    %693 = vxpose.xlu0.b32.cont [4/16] %v686, 128
    %694 = vxpose.xlu0.b32.cont [5/16] %v687, 128
    %695 = vxpose.xlu0.b32.cont [6/16] %v688, 128
    %696 = vxpose.xlu0.b32.cont [7/16] %v689, 128
    %697 = vxpose.xlu0.b32.cont [8/16] 0.0, 128
    %698 = vxpose.xlu0.b32.cont [9/16] 0.0, 128
    %699 = vxpose.xlu0.b32.cont [10/16] 0.0, 128
    %700 = vxpose.xlu0.b32.cont [11/16] 0.0, 128
    %701 = vxpose.xlu0.b32.cont [12/16] 0.0, 128
    %702 = vxpose.xlu0.b32.cont [13/16] 0.0, 128
    %703 = vxpose.xlu0.b32.cont [14/16] 0.0, 128
    %704 = vxpose.xlu0.b32.cont [15/16] 0.0, 128
    %705 = vxpose.xlu0.b32.end [16/16] 0.0, 128
    %v706 = vpop.trf.xlu0
    %v707 = vpop.trf.xlu0
    %v708 = vpop.trf.xlu0
    %v709 = vpop.trf.xlu0
    %v710 = vpop.trf.xlu0
    %v711 = vpop.trf.xlu0
    %v712 = vpop.trf.xlu0
    %v713 = vpop.trf.xlu0
    %v714 = vpop.trf.xlu0
    %v715 = vpop.trf.xlu0
    %v716 = vpop.trf.xlu0
    %v717 = vpop.trf.xlu0
    %v718 = vpop.trf.xlu0
    %v719 = vpop.trf.xlu0
    %v720 = vpop.trf.xlu0
    %v721 = vpop.trf.xlu0
    %vm722 = vcmask 424960
    %723 = vst.msk [vmem:[%s1] sm:$0xff] %vm722, %v706
    %724 = vst.msk [vmem:[%s1 + $0x8] sm:$0xff] %vm722, %v707
    %725 = vst.msk [vmem:[%s1 + $0x10] sm:$0xff] %vm722, %v708
    %726 = vst.msk [vmem:[%s1 + $0x18] sm:$0xff] %vm722, %v709
    %727 = vst.msk [vmem:[%s1 + $0x20] sm:$0xff] %vm722, %v710
    %728 = vst.msk [vmem:[%s1 + $0x28] sm:$0xff] %vm722, %v711
    %729 = vst.msk [vmem:[%s1 + $0x30] sm:$0xff] %vm722, %v712
    %730 = vst.msk [vmem:[%s1 + $0x38] sm:$0xff] %vm722, %v713
    %731 = vst.msk [vmem:[%s1 + $0x40] sm:$0xff] %vm722, %v714
    %732 = vst.msk [vmem:[%s1 + $0x48] sm:$0xff] %vm722, %v715
    %733 = vst.msk [vmem:[%s1 + $0x50] sm:$0xff] %vm722, %v716
    %734 = vst.msk [vmem:[%s1 + $0x58] sm:$0xff] %vm722, %v717
    %735 = vst.msk [vmem:[%s1 + $0x60] sm:$0xff] %vm722, %v718
    %736 = vst.msk [vmem:[%s1 + $0x68] sm:$0xff] %vm722, %v719
    %737 = vst.msk [vmem:[%s1 + $0x70] sm:$0xff] %vm722, %v720
    %738 = vst.msk [vmem:[%s1 + $0x78] sm:$0xff] %vm722, %v721
    // Predicated region
    $region10: #{tpu_custom_call.1} parent=1 // pred_check
      _
    $region11: #{tpu_custom_call.1} parent=1 // pred_check_branch
      %740 = sbr.rel (0) target = $region13
    $region12: #{tpu_custom_call.1} parent=1 // pred_region
      _
    $region13: #{tpu_custom_call.1} parent=1 // pred_fallthru
      _
    // Predicated region
    $region14: #{tpu_custom_call.1} parent=1 // pred_check
      _
    $region15: #{tpu_custom_call.1} parent=1 // pred_check_branch
      %742 = sbr.rel (0) target = $region17
    $region16: #{tpu_custom_call.1} parent=1 // pred_region
      _
    $region17: #{tpu_custom_call.1} parent=1 // pred_fallthru
      _
    %743 = vsyncpa [#allocation3], 1

</llo_original>
